<compile_context>
chip_gen: v5e
topology: v5e:2x2
jax: 0.10.0
libtpu: 0.0.40
codegen_flags: <defaults>
</compile_context>

<pallas_src>
import functools

import jax
import jax.numpy as jnp
from jax.experimental import pallas as pl
from jax.experimental.pallas import tpu as pltpu

_TARGET_BLOCK_BYTES = 2 * 1024 * 1024  # ~2 MiB blocks: big enough to amortize
                                       # per-step overhead, small enough that
                                       # double-buffered in+out fits every
                                       # generation's default scoped VMEM.


def _largest_tile(total, unit, cap):
    """Largest multiple of `unit` that divides `total` and is <= cap.

    Assumes total % unit == 0 (caller guarantees this by padding). Returns at
    least `unit`."""
    cap = max(unit, min(cap, total))
    d = (cap // unit) * unit
    while d > unit:
        if total % d == 0:
            return d
        d -= unit
    return unit


def _pick_tiles(rows, hwp):
    """Pick (t_r, t_hw) targeting ~_TARGET_BLOCK_BYTES f32 blocks."""
    target_elems = max(8 * 128, _TARGET_BLOCK_BYTES // 4)
    if rows % 8 != 0:
        # Full-extent row block is always a legal BlockSpec; keep lanes tiled.
        t_hw = _largest_tile(hwp, 128, max(128, target_elems // max(rows, 1)))
        return rows, t_hw
    t_hw = _largest_tile(hwp, 128, max(128, target_elems // 8))
    t_r = _largest_tile(rows, 8, max(8, target_elems // t_hw))
    return t_r, t_hw


def _stats_kernel(x_ref, sum_ref, ssq_ref):
    """Per-row (= per (n, c)) sum / sum-of-squares, accumulated over spatial
    tiles.  Row-block outputs stay resident across the inner 'arbitrary' axis."""
    @pl.when(pl.program_id(1) == 0)
    def _():
        sum_ref[...] = jnp.zeros_like(sum_ref)
        ssq_ref[...] = jnp.zeros_like(ssq_ref)

    x = x_ref[...].astype(jnp.float32)                 # (t_r, t_hw)
    sum_ref[...] += jnp.sum(x, axis=1, keepdims=True)
    ssq_ref[...] += jnp.sum(x * x, axis=1, keepdims=True)


def _apply_kernel(x_ref, scale_ref, shift_ref, alpha_ref, o_ref):
    """Fused BN (pre-folded scale/shift) + PReLU: one FMA + select per element."""
    x = x_ref[...].astype(jnp.float32)                 # (t_r, t_hw)
    y = x * scale_ref[...] + shift_ref[...]            # per-sublane scalars
    o_ref[...] = jnp.where(y >= 0.0, y, alpha_ref[...] * y).astype(o_ref.dtype)


@functools.partial(jax.jit, static_argnames=("eps",))
def br_forward(x_nchw, gamma, beta, alpha, *, eps=1e-3):
    """BR.forward: training-mode BatchNorm2d(eps) + PReLU, NCHW in/out."""
    N, C, H, W = x_nchw.shape
    HW = H * W
    R = N * C

    # Free reshape for NCHW; pad lanes to a multiple of 128 only if needed so
    # all loads/stores stay lane-dense and unmasked.
    x2 = x_nchw.reshape(R, HW)
    HWp = ((HW + 127) // 128) * 128
    if HWp != HW:
        x2 = jnp.pad(x2, ((0, 0), (0, HWp - HW)))

    t_r, t_hw = _pick_tiles(R, HWp)
    grid_r = R // t_r
    grid_s = HWp // t_hw

    # ---- pass 1: per-row (n, c) sum / sum-of-squares over the spatial axis ----
    row_sum, row_ssq = pl.pallas_call(
        _stats_kernel,
        out_shape=(jax.ShapeDtypeStruct((R, 1), jnp.float32),
                   jax.ShapeDtypeStruct((R, 1), jnp.float32)),
        grid_spec=pltpu.PrefetchScalarGridSpec(
            num_scalar_prefetch=0,
            grid=(grid_r, grid_s),
            in_specs=[pl.BlockSpec((t_r, t_hw), lambda r, s: (r, s))],
            out_specs=[pl.BlockSpec((t_r, 1), lambda r, s: (r, 0)),
                       pl.BlockSpec((t_r, 1), lambda r, s: (r, 0))],
        ),
        compiler_params=pltpu.CompilerParams(
            dimension_semantics=("parallel", "arbitrary")),
    )(x2)

    # ---- tiny per-channel scalar math (hoisted out of the elementwise pass) ----
    count = float(N * HW)                              # true count (no padding)
    ch_sum = row_sum.reshape(N, C).sum(axis=0)         # (C,)
    ch_ssq = row_ssq.reshape(N, C).sum(axis=0)         # (C,)
    mean = ch_sum / count
    var = jnp.maximum(ch_ssq / count - mean * mean, 0.0)   # biased variance
    inv_std = jax.lax.rsqrt(var + jnp.float32(eps))
    scale_c = gamma.astype(jnp.float32) * inv_std
    shift_c = beta.astype(jnp.float32) - mean * scale_c
    alpha_c = alpha.astype(jnp.float32)

    # Tile per-channel scalars to per-row (N*C, 1) so pass 2 broadcasts them as
    # per-sublane scalars.
    scale_r = jnp.tile(scale_c, (N,)).reshape(R, 1)
    shift_r = jnp.tile(shift_c, (N,)).reshape(R, 1)
    alpha_r = jnp.tile(alpha_c, (N,)).reshape(R, 1)

    # ---- pass 2: fused normalize + affine + PReLU (fully parallel) ----
    param_spec = pl.BlockSpec((t_r, 1), lambda r, s: (r, 0))
    out = pl.pallas_call(
        _apply_kernel,
        out_shape=jax.ShapeDtypeStruct((R, HWp), x_nchw.dtype),
        grid_spec=pltpu.PrefetchScalarGridSpec(
            num_scalar_prefetch=0,
            grid=(grid_r, grid_s),
            in_specs=[
                pl.BlockSpec((t_r, t_hw), lambda r, s: (r, s)),
                param_spec,   # scale
                param_spec,   # shift
                param_spec,   # PReLU alpha
            ],
            out_specs=pl.BlockSpec((t_r, t_hw), lambda r, s: (r, s)),
        ),
        compiler_params=pltpu.CompilerParams(
            dimension_semantics=("parallel", "parallel")),
    )(x2, scale_r, shift_r, alpha_r)

    if HWp != HW:
        out = out[:, :HW]
    return out.reshape(N, C, H, W)


if __name__ == "__main__":
    # BR(nOut=4) on a (2, 4, 16, 16) feature map.
    N, C, H, W = 2, 4, 16, 16
    eps = 1e-3

    key = jax.random.PRNGKey(0)
    kx, kg, kb, ka = jax.random.split(key, 4)
    x = jax.random.normal(kx, (N, C, H, W), dtype=jnp.float32)
    gamma = 1.0 + 0.1 * jax.random.normal(kg, (C,), dtype=jnp.float32)
    beta = 0.1 * jax.random.normal(kb, (C,), dtype=jnp.float32)
    alpha = 0.25 + 0.05 * jax.random.normal(ka, (C,), dtype=jnp.float32)

    out = br_forward(x, gamma, beta, alpha, eps=eps)
    out = jax.block_until_ready(out)

    # Pure-JAX reference: training-mode BatchNorm2d (batch stats, biased var)
    # followed by per-channel PReLU.
    mean = jnp.mean(x, axis=(0, 2, 3), keepdims=True)
    var = jnp.mean((x - mean) ** 2, axis=(0, 2, 3), keepdims=True)
    y = (x - mean) / jnp.sqrt(var + eps)
    y = y * gamma.reshape(1, C, 1, 1) + beta.reshape(1, C, 1, 1)
    ref = jnp.where(y >= 0, y, alpha.reshape(1, C, 1, 1) * y)

    assert out.shape == ref.shape
    assert jnp.allclose(out, ref, atol=1e-4, rtol=1e-4)
    # TODO(synk): running_mean / running_var in-place updates (module state,
    # not part of the returned tensor) are not emitted.
    print("KERNEL_OK")
</pallas_src>

<mosaic_0001>
module attributes {stable_mosaic.version = 11 : i64} {
  func.func @_stats_kernel(%arg0: i32, %arg1: i32, %arg2: memref<8x256xf32, #tpu.memory_space<vmem>>, %arg3: memref<8x1xf32, #tpu.memory_space<vmem>>, %arg4: memref<8x1xf32, #tpu.memory_space<vmem>>) attributes {dimension_semantics = [#tpu.dimension_semantics<parallel>, #tpu.dimension_semantics<arbitrary>], iteration_bounds = array<i64: 1, 1>, scalar_prefetch = 0 : i64, scratch_operands = 0 : i64, tpu.core_type = #tpu.core_type<tc>, window_params = [{transform_indices = @transform_0, window_bounds = array<i64: 8, 256>}, {transform_indices = @transform_1, window_bounds = array<i64: 8, 1>}, {transform_indices = @transform_2, window_bounds = array<i64: 8, 1>}]} {
    %c0_i32 = arith.constant 0 : i32
    %0 = arith.cmpi eq, %arg1, %c0_i32 : i32
    %1 = arith.extui %0 : i1 to i32
    %c0_i32_0 = arith.constant 0 : i32
    %2 = arith.cmpi ne, %1, %c0_i32_0 : i32
    scf.if %2 {
      %cst_11 = arith.constant 0.000000e+00 : f32
      %15 = vector.broadcast %cst_11 : f32 to vector<8x1xf32>
      %c0_12 = arith.constant 0 : index
      %c0_13 = arith.constant 0 : index
      %16 = vector.load %arg3[%c0_12, %c0_13] : memref<8x1xf32, #tpu.memory_space<vmem>>, vector<8x1xf32>
      tpu.vector_store %arg3[%c0_12, %c0_13], %15 {strides = array<i32>} : memref<8x1xf32, #tpu.memory_space<vmem>>, vector<8x1xf32>,
      %cst_14 = arith.constant 0.000000e+00 : f32
      %17 = vector.broadcast %cst_14 : f32 to vector<8x1xf32>
      %c0_15 = arith.constant 0 : index
      %c0_16 = arith.constant 0 : index
      %18 = vector.load %arg4[%c0_15, %c0_16] : memref<8x1xf32, #tpu.memory_space<vmem>>, vector<8x1xf32>
      tpu.vector_store %arg4[%c0_15, %c0_16], %17 {strides = array<i32>} : memref<8x1xf32, #tpu.memory_space<vmem>>, vector<8x1xf32>,
    } else {
    }
    %c0 = arith.constant 0 : index
    %c0_1 = arith.constant 0 : index
    %3 = vector.load %arg2[%c0, %c0_1] : memref<8x256xf32, #tpu.memory_space<vmem>>, vector<8x256xf32>
    %c0_2 = arith.constant 0 : index
    %c0_3 = arith.constant 0 : index
    %4 = vector.load %arg3[%c0_2, %c0_3] : memref<8x1xf32, #tpu.memory_space<vmem>>, vector<8x1xf32>
    %cst = arith.constant dense<0.000000e+00> : vector<8xf32>
    %5 = vector.multi_reduction <add>, %3, %cst [1] : vector<8x256xf32> to vector<8xf32>
    %6 = vector.shape_cast %5 : vector<8xf32> to vector<8x1xf32>
    %7 = arith.addf %4, %6 : vector<8x1xf32>
    %c0_4 = arith.constant 0 : index
    %c0_5 = arith.constant 0 : index
    %8 = vector.load %arg3[%c0_4, %c0_5] : memref<8x1xf32, #tpu.memory_space<vmem>>, vector<8x1xf32>
    tpu.vector_store %arg3[%c0_4, %c0_5], %7 {strides = array<i32>} : memref<8x1xf32, #tpu.memory_space<vmem>>, vector<8x1xf32>,
    %c0_6 = arith.constant 0 : index
    %c0_7 = arith.constant 0 : index
    %9 = vector.load %arg4[%c0_6, %c0_7] : memref<8x1xf32, #tpu.memory_space<vmem>>, vector<8x1xf32>
    %10 = arith.mulf %3, %3 : vector<8x256xf32>
    %cst_8 = arith.constant dense<0.000000e+00> : vector<8xf32>
    %11 = vector.multi_reduction <add>, %10, %cst_8 [1] : vector<8x256xf32> to vector<8xf32>
    %12 = vector.shape_cast %11 : vector<8xf32> to vector<8x1xf32>
    %13 = arith.addf %9, %12 : vector<8x1xf32>
    %c0_9 = arith.constant 0 : index
    %c0_10 = arith.constant 0 : index
    %14 = vector.load %arg4[%c0_9, %c0_10] : memref<8x1xf32, #tpu.memory_space<vmem>>, vector<8x1xf32>
    tpu.vector_store %arg4[%c0_9, %c0_10], %13 {strides = array<i32>} : memref<8x1xf32, #tpu.memory_space<vmem>>, vector<8x1xf32>,
    return
  }
  func.func @transform_0(%arg0: i32, %arg1: i32) -> (i32, i32) {
    %c0_i32 = arith.constant 0 : i32
    return %arg0, %arg1 : i32, i32
  }
  func.func @transform_1(%arg0: i32, %arg1: i32) -> (i32, i32) {
    %c0_i32 = arith.constant 0 : i32
    %c0_i32_0 = arith.constant 0 : i32
    return %arg0, %c0_i32 : i32, i32
  }
  func.func @transform_2(%arg0: i32, %arg1: i32) -> (i32, i32) {
    %c0_i32 = arith.constant 0 : i32
    %c0_i32_0 = arith.constant 0 : i32
    return %arg0, %c0_i32 : i32, i32
  }
}

module attributes {stable_mosaic.version = 11 : i64} {
  func.func @_apply_kernel(%arg0: i32, %arg1: i32, %arg2: memref<8x256xf32, #tpu.memory_space<vmem>>, %arg3: memref<8x1xf32, #tpu.memory_space<vmem>>, %arg4: memref<8x1xf32, #tpu.memory_space<vmem>>, %arg5: memref<8x1xf32, #tpu.memory_space<vmem>>, %arg6: memref<8x256xf32, #tpu.memory_space<vmem>>) attributes {dimension_semantics = [#tpu.dimension_semantics<parallel>, #tpu.dimension_semantics<parallel>], iteration_bounds = array<i64: 1, 1>, scalar_prefetch = 0 : i64, scratch_operands = 0 : i64, tpu.core_type = #tpu.core_type<tc>, window_params = [{transform_indices = @transform_0, window_bounds = array<i64: 8, 256>}, {transform_indices = @transform_1, window_bounds = array<i64: 8, 1>}, {transform_indices = @transform_2, window_bounds = array<i64: 8, 1>}, {transform_indices = @transform_3, window_bounds = array<i64: 8, 1>}, {transform_indices = @transform_4, window_bounds = array<i64: 8, 256>}]} {
    %c0 = arith.constant 0 : index
    %c0_0 = arith.constant 0 : index
    %0 = vector.load %arg2[%c0, %c0_0] : memref<8x256xf32, #tpu.memory_space<vmem>>, vector<8x256xf32>
    %c0_1 = arith.constant 0 : index
    %c0_2 = arith.constant 0 : index
    %1 = vector.load %arg3[%c0_1, %c0_2] : memref<8x1xf32, #tpu.memory_space<vmem>>, vector<8x1xf32>
    %2 = vector.broadcast %1 : vector<8x1xf32> to vector<8x256xf32>
    %3 = arith.mulf %0, %2 : vector<8x256xf32>
    %c0_3 = arith.constant 0 : index
    %c0_4 = arith.constant 0 : index
    %4 = vector.load %arg4[%c0_3, %c0_4] : memref<8x1xf32, #tpu.memory_space<vmem>>, vector<8x1xf32>
    %5 = vector.broadcast %4 : vector<8x1xf32> to vector<8x256xf32>
    %6 = arith.addf %3, %5 : vector<8x256xf32>
    %cst = arith.constant 0.000000e+00 : f32
    %7 = vector.broadcast %cst : f32 to vector<8x256xf32>
    %8 = arith.cmpf oge, %6, %7 : vector<8x256xf32>
    %c0_5 = arith.constant 0 : index
    %c0_6 = arith.constant 0 : index
    %9 = vector.load %arg5[%c0_5, %c0_6] : memref<8x1xf32, #tpu.memory_space<vmem>>, vector<8x1xf32>
    %10 = vector.broadcast %9 : vector<8x1xf32> to vector<8x256xf32>
    %11 = arith.mulf %10, %6 : vector<8x256xf32>
    %12 = arith.select %8, %6, %11 : vector<8x256xi1>, vector<8x256xf32>
    %c0_7 = arith.constant 0 : index
    %c0_8 = arith.constant 0 : index
    %13 = vector.load %arg6[%c0_7, %c0_8] : memref<8x256xf32, #tpu.memory_space<vmem>>, vector<8x256xf32>
    tpu.vector_store %arg6[%c0_7, %c0_8], %12 {strides = array<i32>} : memref<8x256xf32, #tpu.memory_space<vmem>>, vector<8x256xf32>,
    return
  }
  func.func @transform_0(%arg0: i32, %arg1: i32) -> (i32, i32) {
    %c0_i32 = arith.constant 0 : i32
    return %arg0, %arg1 : i32, i32
  }
  func.func @transform_1(%arg0: i32, %arg1: i32) -> (i32, i32) {
    %c0_i32 = arith.constant 0 : i32
    %c0_i32_0 = arith.constant 0 : i32
    return %arg0, %c0_i32 : i32, i32
  }
  func.func @transform_2(%arg0: i32, %arg1: i32) -> (i32, i32) {
    %c0_i32 = arith.constant 0 : i32
    %c0_i32_0 = arith.constant 0 : i32
    return %arg0, %c0_i32 : i32, i32
  }
  func.func @transform_3(%arg0: i32, %arg1: i32) -> (i32, i32) {
    %c0_i32 = arith.constant 0 : i32
    %c0_i32_0 = arith.constant 0 : i32
    return %arg0, %c0_i32 : i32, i32
  }
  func.func @transform_4(%arg0: i32, %arg1: i32) -> (i32, i32) {
    %c0_i32 = arith.constant 0 : i32
    return %arg0, %arg1 : i32, i32
  }
}

</mosaic_0001>

<llo_original>
// kernel: tile.28
$region0: #{tile.28}
  #allocation0 [shape = 's32[1]{0}', space=sflag, size = 0x4, scoped, tag = 'scoped memory for tile.28']
  %s0 = inlined_call_operand.vmem [shape: f32[4], index: 0, kind: input, shape index: {}]
  %s1 = inlined_call_operand.vmem [shape: f32[2,4], index: 1, kind: output, shape index: {}]
  // Predicated region
  $region2: #{tile.28} parent=0 // pred_check
    _
  $region3: #{tile.28} parent=0 // pred_check_branch
    %3 = sbr.rel (0) target = $region5
  $region4: #{tile.28} parent=0 // pred_region
    _
  $region5: #{tile.28} parent=0 // pred_fallthru
    _
  %v4 = vld [vmem:[%s0] ss:$0 sm:$0xff]
  %5 = vst [vmem:[%s1] sm:$0x3] %v4

// kernel: tile.2
$region0: #{tile.2}
  %s0 = inlined_call_operand.vmem [shape: f32[2,4], index: 0, kind: input, shape index: {}]
  %s1 = inlined_call_operand.vmem [shape: f32[8,1], index: 1, kind: output, shape index: {}]
  $region1: #{tile.2} parent=0
    #allocation0 [shape = 'u8[4096]{0}', space=vmem, size = 0x1000, scoped, tag = 'scoped mem for input reshape']
    %s3 = ssub.s32 4, 1
    %v4 = vld [vmem:[%s0] sm:%s3]
    %5 = vst [vmem:[#allocation0] sm:%s3] %v4
    %v6 = vld [vmem:[#allocation0] sm:$0x3]
    %vm7 = vcmask 7168
    %8 = vst.msk [vmem:[%s1] ss:$4 sm:$0x3] %vm7, %v6
    %v9 = vld [vmem:[#allocation0] sm:$0x3]
    %10 = vrot.lane.b32.xlu0 %v9, 127
    %v11 = vpop.permute.xlu0 %10
    %vm12 = vcmask 7168
    %s13 = scalar_lea.vmem %s1, 1
    %14 = vst.msk [vmem:[%s13] ss:$4 sm:$0x3] %vm12, %v11
    %v15 = vld [vmem:[#allocation0] sm:$0x3]
    %16 = vrot.lane.b32.xlu0 %v15, 126
    %v17 = vpop.permute.xlu0 %16
    %vm18 = vcmask 7168
    %s19 = scalar_lea.vmem %s1, 2
    %20 = vst.msk [vmem:[%s19] ss:$4 sm:$0x3] %vm18, %v17
    %v21 = vld [vmem:[#allocation0] sm:$0x3]
    %22 = vrot.lane.b32.xlu0 %v21, 125
    %v23 = vpop.permute.xlu0 %22
    %vm24 = vcmask 7168
    %s25 = scalar_lea.vmem %s1, 3
    %26 = vst.msk [vmem:[%s25] ss:$4 sm:$0x3] %vm24, %v23

// kernel: br_forward.2
$region0: #{br_forward.2}
  #allocation0 [shape = 'u32[]', space=smem, size = 0x4, offset = 0x4, fixed_abs, tag = 'smem constant byte address 0x4 - core index']
  #allocation1 [shape = 'u32[72,128]{1,0:T(1,128)}', space=vmem, size = 0x9000, scoped, tag = 'internal scratch']
  %s0 = inlined_call_operand.vmem [shape: f32[8,256], index: 0, kind: input, shape index: {}]
  %s1 = inlined_call_operand.vmem [shape: f32[8,1], index: 1, kind: output, shape index: {0}]
  %s2 = inlined_call_operand.vmem [shape: f32[8,1], index: 2, kind: output, shape index: {1}]
  %3 = xla_tuple %s1, %s2
  %s4 = sld [smem:[#allocation0]]
  $region26: #{br_forward.2} parent=0
    _
  %s6 = ssub.s32 1, %s4
  %s7 = scalar_select 0, %s6, %s4
  // Predicated region
  $region2: #{br_forward.2} parent=0 // pred_check
    _
  $region3: #{br_forward.2} parent=0 // pred_check_branch
    %9 = sbr.rel (0) target = $region5
  $region4: #{br_forward.2} parent=0 // pred_region
    _
  $region5: #{br_forward.2} parent=0 // pred_fallthru
    _
  %p10 = scmp.eq.s32.totalorder 0, 0
  // Predicated region
  $region6: #{br_forward.2} parent=0 // pred_check
    %p11 = pneg %p10
  $region7: #{br_forward.2} parent=0 // pred_check_branch
    %13 = sbr.rel (%p11) target = $region9
  $region8: #{br_forward.2} parent=0 // pred_region
    %vm14 = vcmask 7168
    %15 = vst.msk [vmem:[%s1] sm:$0xff] %vm14, 0.0
    %16 = vst.msk [vmem:[%s2] sm:$0xff] %vm14, 0.0
  $region9: #{br_forward.2} parent=0 // pred_fallthru
    _
  %v17 = vld [vmem:[%s0] sm:$0xff]
  %v18 = vld [vmem:[%s0 + $0x8] sm:$0xff]
  %v19 = vld [vmem:[%s1] sm:$0xff]
  %v20 = vadd.f32 %v17, %v18
  %21 = vadd.xlane.f32.xlu0 %v20
  %v22 = vpop.xlane.xlu0 %21
  %v23 = vadd.f32 %v19, %v22
  %vm24 = vcmask 7168
  %25 = vst.msk [vmem:[%s1] sm:$0xff] %vm24, %v23
  %v26 = vld [vmem:[%s2] sm:$0xff]
  %v27 = vmul.f32 %v17, %v17
  %v28 = vmul.f32 %v18, %v18
  %v29 = vadd.f32 %v27, %v28
  %30 = vadd.xlane.f32.xlu0 %v29
  %v31 = vpop.xlane.xlu0 %30
  %v32 = vadd.f32 %v26, %v31
  %33 = vst.msk [vmem:[%s2] sm:$0xff] %vm24, %v32
  // Predicated region
  $region10: #{br_forward.2} parent=0 // pred_check
    _
  $region11: #{br_forward.2} parent=0 // pred_check_branch
    %35 = sbr.rel (0) target = $region13
  $region12: #{br_forward.2} parent=0 // pred_region
    _
  $region13: #{br_forward.2} parent=0 // pred_fallthru
    _
  // Predicated region
  $region14: #{br_forward.2} parent=0 // pred_check
    _
  $region15: #{br_forward.2} parent=0 // pred_check_branch
    %37 = sbr.rel (0) target = $region17
  $region16: #{br_forward.2} parent=0 // pred_region
    _
  $region17: #{br_forward.2} parent=0 // pred_fallthru
    _
  // Predicated region
  $region18: #{br_forward.2} parent=0 // pred_check
    _
  $region19: #{br_forward.2} parent=0 // pred_check_branch
    %39 = sbr.rel (0) target = $region21
  $region20: #{br_forward.2} parent=0 // pred_region
    _
  $region21: #{br_forward.2} parent=0 // pred_fallthru
    _
  // Predicated region
  $region22: #{br_forward.2} parent=0 // pred_check
    _
  $region23: #{br_forward.2} parent=0 // pred_check_branch
    %41 = sbr.rel (0) target = $region25
  $region24: #{br_forward.2} parent=0 // pred_region
    _
  $region25: #{br_forward.2} parent=0 // pred_fallthru
    _

// kernel: br_forward.3
$region0: #{br_forward.3}
  #allocation0 [shape = 'u32[]', space=smem, size = 0x4, offset = 0x4, fixed_abs, tag = 'smem constant byte address 0x4 - core index']
  #allocation1 [shape = 'u32[72,128]{1,0:T(1,128)}', space=vmem, size = 0x9000, scoped, tag = 'internal scratch']
  %s0 = inlined_call_operand.vmem [shape: f32[8,256], index: 0, kind: input, shape index: {}]
  %s1 = inlined_call_operand.vmem [shape: f32[8,1], index: 1, kind: input, shape index: {}]
  %s2 = inlined_call_operand.vmem [shape: f32[8,1], index: 2, kind: input, shape index: {}]
  %s3 = inlined_call_operand.vmem [shape: f32[8,1], index: 3, kind: input, shape index: {}]
  %s4 = inlined_call_operand.vmem [shape: f32[8,256], index: 4, kind: output, shape index: {}]
  %s5 = sld [smem:[#allocation0]]
  $region26: #{br_forward.3} parent=0
    _
  %s7 = ssub.s32 1, %s5
  %s8 = scalar_select 0, %s7, %s5
  // Predicated region
  $region2: #{br_forward.3} parent=0 // pred_check
    _
  $region3: #{br_forward.3} parent=0 // pred_check_branch
    %10 = sbr.rel (0) target = $region5
  $region4: #{br_forward.3} parent=0 // pred_region
    _
  $region5: #{br_forward.3} parent=0 // pred_fallthru
    _
  // Predicated region
  $region6: #{br_forward.3} parent=0 // pred_check
    _
  $region7: #{br_forward.3} parent=0 // pred_check_branch
    %12 = sbr.rel (0) target = $region9
  $region8: #{br_forward.3} parent=0 // pred_region
    _
  $region9: #{br_forward.3} parent=0 // pred_fallthru
    _
  // Predicated region
  $region10: #{br_forward.3} parent=0 // pred_check
    _
  $region11: #{br_forward.3} parent=0 // pred_check_branch
    %14 = sbr.rel (0) target = $region13
  $region12: #{br_forward.3} parent=0 // pred_region
    _
  $region13: #{br_forward.3} parent=0 // pred_fallthru
    _
  // Predicated region
  $region14: #{br_forward.3} parent=0 // pred_check
    _
  $region15: #{br_forward.3} parent=0 // pred_check_branch
    %16 = sbr.rel (0) target = $region17
  $region16: #{br_forward.3} parent=0 // pred_region
    _
  $region17: #{br_forward.3} parent=0 // pred_fallthru
    _
  %v17 = vld [vmem:[%s0] sm:$0xff]
  %v18 = vld [vmem:[%s0 + $0x8] sm:$0xff]
  %v19 = vld [vmem:[%s1] sm:$0xff]
  %21 = vset.pattern.permute.xlu0 0
  %22 = vperm.xlu0 %21, %v19
  %v23 = vpop.permute.xlu0 %22
  %v25 = vmul.f32 %v17, %v23
  %v26 = vmul.f32 %v18, %v23
  %v27 = vld [vmem:[%s2] sm:$0xff]
  %29 = vset.pattern.permute.xlu0 0
  %30 = vperm.xlu0 %29, %v27
  %v31 = vpop.permute.xlu0 %30
  %v33 = vadd.f32 %v25, %v31
  %v34 = vadd.f32 %v26, %v31
  %vm35 = vcmp.ge.f32.partialorder %v33, 0.0
  %vm36 = vcmp.ge.f32.partialorder %v34, 0.0
  %v37 = vld [vmem:[%s3] sm:$0xff]
  %39 = vset.pattern.permute.xlu0 0
  %40 = vperm.xlu0 %39, %v37
  %v41 = vpop.permute.xlu0 %40
  %v43 = vmul.f32 %v41, %v33
  %v44 = vmul.f32 %v41, %v34
  %v45 = vsel %vm35, %v33, %v43
  %v46 = vsel %vm36, %v34, %v44
  %47 = vst [vmem:[%s4] sm:$0xff] %v45
  %48 = vst [vmem:[%s4 + $0x8] sm:$0xff] %v46
  // Predicated region
  $region18: #{br_forward.3} parent=0 // pred_check
    _
  $region19: #{br_forward.3} parent=0 // pred_check_branch
    %50 = sbr.rel (0) target = $region21
  $region20: #{br_forward.3} parent=0 // pred_region
    _
  $region21: #{br_forward.3} parent=0 // pred_fallthru
    _
  // Predicated region
  $region22: #{br_forward.3} parent=0 // pred_check
    _
  $region23: #{br_forward.3} parent=0 // pred_check_branch
    %52 = sbr.rel (0) target = $region25
  $region24: #{br_forward.3} parent=0 // pred_region
    _
  $region25: #{br_forward.3} parent=0 // pred_fallthru
    _

</llo_original>
